<compile_context>
chip_gen: v5e
topology: v5e:2x2
jax: 0.10.0
libtpu: 0.0.40
codegen_flags: <defaults>
</compile_context>

<pallas_src>
import jax
import jax.numpy as jnp
from jax import lax
from jax.experimental import pallas as pl
from jax.experimental.pallas import tpu as pltpu


# ----------------------------------------------------------------------------
# Helpers
# ----------------------------------------------------------------------------

def _vmem_capacity_bytes():
    """Physical VMEM of the current TPU (64 MiB fallback, i.e. v7x-safe)."""
    try:
        info = pltpu.get_tpu_info()
        for name in ("vmem_capacity_bytes", "vmem_size_bytes", "vmem_bytes"):
            v = getattr(info, name, None)
            if v:
                return int(v)
    except Exception:
        pass
    return 64 * 1024 * 1024


_ROLL_MATCHES_JNP = None


def _roll_matches_jnp():
    """Probe once whether pltpu.roll uses the same shift sign as jnp.roll."""
    global _ROLL_MATCHES_JNP
    if _ROLL_MATCHES_JNP is None:
        def probe(x_ref, o_ref):
            o_ref[...] = pltpu.roll(x_ref[...], shift=1, axis=1)

        x = jnp.arange(8 * 128, dtype=jnp.float32).reshape(8, 128)
        y = pl.pallas_call(
            probe, out_shape=jax.ShapeDtypeStruct((8, 128), jnp.float32))(x)
        _ROLL_MATCHES_JNP = bool(jnp.allclose(y, jnp.roll(x, 1, axis=1)))
    return _ROLL_MATCHES_JNP


def _pick_time_tile(L, Cin, Cout, K, itemsize, time_tile=None):
    """Largest lane-aligned time tile that divides L and fits the VMEM budget."""
    if L % 128 != 0:
        return L                      # small / odd length: one tile per row
    if time_tile is None:
        # Double-buffered x-in / y-out blocks plus in-kernel f32 temporaries
        # (K shifted copies or the im2col stack, and the accumulator).
        budget = int(_vmem_capacity_bytes() * 0.45)
        per_col = 2 * (Cin + Cout) * itemsize + (K * Cin + 2 * Cout) * 4
        time_tile = budget // max(per_col, 1)
    tt = max(128, (int(time_tile) // 128) * 128)
    TL = min(L, tt)
    while L % TL != 0:                # terminates at 128 (L % 128 == 0)
        TL -= 128
    return TL


# ----------------------------------------------------------------------------
# Kernel
# ----------------------------------------------------------------------------

def _make_kernel(K, pad, Cin, Cout, TL, halo_w, use_roll, roll_fwd, mode):

    def _roll_right(v, s, n):
        # result[:, t] = v[:, (t - s) mod n], independent of the HW convention.
        amt = s if roll_fwd else (n - s) % n
        return pltpu.roll(v, shift=amt, axis=1)

    def kernel(x_ref, w_ref, b_ref, o_ref, halo_ref):
        # x_ref   : (1, Cin, TL)            current time tile (NCL)
        # w_ref   : (Cout, K*Cin) or (K, Cout, Cin)
        # b_ref   : (Cout, 1)
        # o_ref   : (1, Cout, TL)
        # halo_ref: (Cin, halo_w)           lane-aligned tail of previous tile
        j = pl.program_id(1)                # time-tile index (sequential)
        x_tile = x_ref[0]                   # (Cin, TL)

        if pad > 0:
            @pl.when(j == 0)
            def _():                        # causal zero padding at t < 0
                halo_ref[...] = jnp.zeros_like(halo_ref)
            halo = halo_ref[...]            # (Cin, halo_w)

        # ---- K causally shifted copies of the tile -------------------------
        if pad == 0:
            shifted = [x_tile]
        elif use_roll:
            # Lane-aligned path: XLU roll + splice the halo into the first `s`
            # lanes with a lane mask.  No misaligned slices, no big concat.
            lane = lax.broadcasted_iota(jnp.int32, (Cin, halo_w), 1)
            shifted = []
            for k in range(K):
                s = pad - k
                if s == 0:
                    shifted.append(x_tile)
                    continue
                rx = _roll_right(x_tile, s, TL)        # (Cin, TL)
                rh = _roll_right(halo, s, halo_w)      # (Cin, halo_w)
                head = jnp.where(lane < s, rh, rx[:, :halo_w])
                if TL > halo_w:
                    shifted.append(
                        jnp.concatenate([head, rx[:, halo_w:]], axis=1))
                else:
                    shifted.append(head)
        else:
            # Tiny / odd tile (TL < 128): single lane slab, alignment moot.
            xw = jnp.concatenate([halo, x_tile], axis=1)       # (Cin, TL+pad)
            shifted = [xw[:, k:k + TL] for k in range(K)]

        # ---- contraction ----------------------------------------------------
        if mode == "vpu":
            # Channels are tiny: the MXU would be nearly idle, so do Cin*K
            # VPU FMAs on (Cout, TL) vregs; stays HBM-bandwidth bound.
            w = w_ref[...].astype(jnp.float32)                 # (Cout, K*Cin)
            acc = jnp.zeros((Cout, TL), jnp.float32)
            for k in range(K):
                xs = shifted[k].astype(jnp.float32)
                for c in range(Cin):
                    i = k * Cin + c
                    acc = acc + w[:, i:i + 1] * xs[c:c + 1, :]
        elif mode == "stack":
            # One deep MXU contraction over K*Cin (fills 256x256 MXUs better).
            stack = jnp.concatenate(shifted, axis=0)           # (K*Cin, TL)
            acc = jnp.dot(w_ref[...], stack,
                          preferred_element_type=jnp.float32)
        else:  # "kdot"
            acc = jnp.dot(w_ref[0], shifted[0],
                          preferred_element_type=jnp.float32)
            for k in range(1, K):
                acc = acc + jnp.dot(w_ref[k], shifted[k],
                                    preferred_element_type=jnp.float32)

        # Bias added once, after the dot chain.
        o_ref[0] = (acc + b_ref[...].astype(jnp.float32)).astype(o_ref.dtype)

        if pad > 0:
            # Carry this tile's lane-aligned tail for the next time tile.
            halo_ref[...] = x_tile[:, TL - halo_w:]

    return kernel


# ----------------------------------------------------------------------------
# Wrapper
# ----------------------------------------------------------------------------

def causal_conv1d(x, weight, bias, *, time_tile=None):
    """x: (B, Cin, L), weight: (Cout, Cin, K), bias: (Cout,) -> (B, Cout, L)."""
    B, Cin, L = x.shape
    Cout, Cin_w, K = weight.shape
    assert Cin_w == Cin
    pad = K - 1
    itemsize = x.dtype.itemsize

    TL = _pick_time_tile(L, Cin, Cout, K, itemsize, time_tile)
    assert L % TL == 0 and pad <= TL, (L, TL, pad)
    num_tiles = L // TL

    use_roll = (TL % 128 == 0) and (pad <= 128)
    halo_w = 1 if pad == 0 else (128 if use_roll else pad)
    roll_fwd = _roll_matches_jnp() if (pad > 0 and use_roll) else True

    # Size-gated contraction strategy.
    if Cin * K <= 64 and Cout <= 16:
        mode = "vpu"
    elif Cin % 8 == 0:
        mode = "stack"
    else:
        mode = "kdot"

    # Tiny parameter-layout plumbing only (no full-tensor transposes).
    if mode == "kdot":
        w_arg = jnp.transpose(weight, (2, 0, 1)).astype(x.dtype)      # (K,Co,Ci)
        w_spec = pl.BlockSpec((K, Cout, Cin), lambda b, j: (0, 0, 0))
    else:
        # w2[co, k*Cin + c] = weight[co, c, k]
        w_arg = jnp.transpose(weight, (0, 2, 1)).reshape(
            Cout, K * Cin).astype(x.dtype)                             # (Co,K*Ci)
        w_spec = pl.BlockSpec((Cout, K * Cin), lambda b, j: (0, 0))
    b_arg = bias.reshape(Cout, 1)

    kernel = _make_kernel(K, pad, Cin, Cout, TL, halo_w, use_roll, roll_fwd,
                          mode)

    # Generous, generation-aware VMEM limit (v7x: 64 MiB phys; v5e/v6e: 128).
    est = (2 * (Cin + Cout) * TL * itemsize        # double-buffered in/out
           + (K * Cin + 2 * Cout) * TL * 4         # in-kernel f32 temporaries
           + Cin * halo_w * itemsize               # halo scratch
           + 2 * (K * Cin * Cout + Cout) * 4)      # parameters
    cap = _vmem_capacity_bytes()
    vmem_limit = int(min(cap * 0.9, max(32 * 1024 * 1024, est * 2)))

    return pl.pallas_call(
        kernel,
        out_shape=jax.ShapeDtypeStruct((B, Cout, L), x.dtype),
        grid_spec=pltpu.PrefetchScalarGridSpec(
            num_scalar_prefetch=0,
            grid=(B, num_tiles),
            in_specs=[
                pl.BlockSpec((1, Cin, TL), lambda b, j: (b, 0, j)),
                w_spec,
                pl.BlockSpec((Cout, 1), lambda b, j: (0, 0)),
            ],
            out_specs=pl.BlockSpec((1, Cout, TL), lambda b, j: (b, 0, j)),
            scratch_shapes=[pltpu.VMEM((Cin, halo_w), x.dtype)],
        ),
        compiler_params=pltpu.CompilerParams(
            # Time MUST stay last + "arbitrary": the halo carry is sequential.
            dimension_semantics=("parallel", "arbitrary"),
            vmem_limit_bytes=vmem_limit),
    )(x, w_arg, b_arg)


# ----------------------------------------------------------------------------
# Reference + tests
# ----------------------------------------------------------------------------

def _reference(x, weight, bias, K):
    y = lax.conv_general_dilated(
        x, weight, window_strides=(1,), padding=[(K - 1, 0)],
        dimension_numbers=("NCH", "OIH", "NCH"),
        precision=lax.Precision.HIGHEST)
    return y + bias[None, :, None]


def _init_params(key, Cin, Cout, K):
    kw, kb = jax.random.split(key)
    fan_in = Cin * K
    bound = 1.0 / (fan_in ** 0.5)
    weight = jax.random.uniform(kw, (Cout, Cin, K), jnp.float32, -bound, bound)
    bias = jax.random.uniform(kb, (Cout,), jnp.float32, -bound, bound)
    return weight, bias


if __name__ == "__main__":
    key = jax.random.PRNGKey(0)
    k1, k2, k3, k4 = jax.random.split(key, 4)

    # 1) Module config: CausalConv1d(in_channels=4, out_channels=8, kernel_size=3)
    B, Cin, Cout, K, L = 2, 4, 8, 3, 16
    weight, bias = _init_params(k1, Cin, Cout, K)
    x = jax.random.normal(k2, (B, Cin, L), jnp.float32)
    y = causal_conv1d(x, weight, bias)
    jax.block_until_ready(y)
    ref = _reference(x, weight, bias, K)
    assert y.shape == (B, Cout, L), y.shape
    assert jnp.allclose(y, ref, atol=1e-5, rtol=1e-5), float(
        jnp.max(jnp.abs(y - ref)))

    # 2) Longer sequence, two 128-lane time tiles: exercises the roll+mask halo
    #    splice and the sequential VMEM halo carry (VPU contraction path).
    L2 = 256
    x2 = jax.random.normal(k3, (B, Cin, L2), jnp.float32)
    y2 = causal_conv1d(x2, weight, bias, time_tile=128)
    jax.block_until_ready(y2)
    ref2 = _reference(x2, weight, bias, K)
    assert y2.shape == (B, Cout, L2), y2.shape
    assert jnp.allclose(y2, ref2, atol=1e-5, rtol=1e-5), float(
        jnp.max(jnp.abs(y2 - ref2)))

    # 3) Wider channels: exercises the im2col stack + single deep MXU dot path.
    Cin3, Cout3 = 32, 32
    weight3, bias3 = _init_params(k4, Cin3, Cout3, K)
    x3 = jax.random.normal(k2, (B, Cin3, L2), jnp.float32)
    y3 = causal_conv1d(x3, weight3, bias3, time_tile=128)
    jax.block_until_ready(y3)
    ref3 = _reference(x3, weight3, bias3, K)
    assert y3.shape == (B, Cout3, L2), y3.shape
    assert jnp.allclose(y3, ref3, atol=1e-4, rtol=1e-4), float(
        jnp.max(jnp.abs(y3 - ref3)))

    print("KERNEL_OK")
</pallas_src>

<mosaic_0001>
module attributes {stable_mosaic.version = 11 : i64} {
  func.func @kernel(%arg0: i32, %arg1: i32, %arg2: memref<1x4x16xf32, #tpu.memory_space<vmem>>, %arg3: memref<8x12xf32, #tpu.memory_space<vmem>>, %arg4: memref<8x1xf32, #tpu.memory_space<vmem>>, %arg5: memref<1x8x16xf32, #tpu.memory_space<vmem>>, %arg6: memref<4x2xf32, #tpu.memory_space<vmem>>) attributes {dimension_semantics = [#tpu.dimension_semantics<parallel>, #tpu.dimension_semantics<arbitrary>], iteration_bounds = array<i64: 2, 1>, scalar_prefetch = 0 : i64, scratch_operands = 1 : i64, tpu.core_type = #tpu.core_type<tc>, window_params = [{transform_indices = @transform_0, window_bounds = array<i64: 1, 4, 16>}, {pipeline_mode = #tpu.pipeline_mode<synchronous>, transform_indices = @transform_1, window_bounds = array<i64: 8, 12>}, {pipeline_mode = #tpu.pipeline_mode<synchronous>, transform_indices = @transform_2, window_bounds = array<i64: 8, 1>}, {transform_indices = @transform_3, window_bounds = array<i64: 1, 8, 16>}]} {
    %c0 = arith.constant 0 : index
    %c0_0 = arith.constant 0 : index
    %c0_1 = arith.constant 0 : index
    %0 = vector.load %arg2[%c0, %c0_0, %c0_1] : memref<1x4x16xf32, #tpu.memory_space<vmem>>, vector<1x4x16xf32>
    %1 = vector.shape_cast %0 : vector<1x4x16xf32> to vector<4x16xf32>
    %c0_i32 = arith.constant 0 : i32
    %2 = arith.cmpi eq, %arg1, %c0_i32 : i32
    %3 = arith.extui %2 : i1 to i32
    %c0_i32_2 = arith.constant 0 : i32
    %4 = arith.cmpi ne, %3, %c0_i32_2 : i32
    scf.if %4 {
      %cst_14 = arith.constant 0.000000e+00 : f32
      %92 = vector.broadcast %cst_14 : f32 to vector<4x2xf32>
      %c0_15 = arith.constant 0 : index
      %c0_16 = arith.constant 0 : index
      %93 = vector.load %arg6[%c0_15, %c0_16] : memref<4x2xf32, #tpu.memory_space<vmem>>, vector<4x2xf32>
      tpu.vector_store %arg6[%c0_15, %c0_16], %92 {strides = array<i32>} : memref<4x2xf32, #tpu.memory_space<vmem>>, vector<4x2xf32>,
    } else {
    }
    %c0_3 = arith.constant 0 : index
    %c0_4 = arith.constant 0 : index
    %5 = vector.load %arg6[%c0_3, %c0_4] : memref<4x2xf32, #tpu.memory_space<vmem>>, vector<4x2xf32>
    %6 = tpu.concatenate %5, %1 in 1 : vector<4x2xf32>, vector<4x16xf32> -> vector<4x18xf32>
    %7 = vector.extract_strided_slice %6 {offsets = [0, 0], sizes = [4, 16], strides = [1, 1]} : vector<4x18xf32> to vector<4x16xf32>
    %8 = vector.extract_strided_slice %6 {offsets = [0, 1], sizes = [4, 16], strides = [1, 1]} : vector<4x18xf32> to vector<4x16xf32>
    %9 = vector.extract_strided_slice %6 {offsets = [0, 2], sizes = [4, 16], strides = [1, 1]} : vector<4x18xf32> to vector<4x16xf32>
    %c0_5 = arith.constant 0 : index
    %c0_6 = arith.constant 0 : index
    %10 = vector.load %arg3[%c0_5, %c0_6] : memref<8x12xf32, #tpu.memory_space<vmem>>, vector<8x12xf32>
    %cst = arith.constant 0.000000e+00 : f32
    %11 = vector.broadcast %cst : f32 to vector<8x16xf32>
    %12 = vector.extract_strided_slice %10 {offsets = [0, 0], sizes = [8, 1], strides = [1, 1]} : vector<8x12xf32> to vector<8x1xf32>
    %13 = vector.extract_strided_slice %7 {offsets = [0, 0], sizes = [1, 16], strides = [1, 1]} : vector<4x16xf32> to vector<1x16xf32>
    %14 = vector.broadcast %12 : vector<8x1xf32> to vector<8x16xf32>
    %15 = vector.broadcast %13 : vector<1x16xf32> to vector<8x16xf32>
    %16 = arith.mulf %14, %15 : vector<8x16xf32>
    %17 = arith.addf %11, %16 : vector<8x16xf32>
    %18 = vector.extract_strided_slice %10 {offsets = [0, 1], sizes = [8, 1], strides = [1, 1]} : vector<8x12xf32> to vector<8x1xf32>
    %19 = vector.extract_strided_slice %7 {offsets = [1, 0], sizes = [1, 16], strides = [1, 1]} : vector<4x16xf32> to vector<1x16xf32>
    %20 = vector.broadcast %18 : vector<8x1xf32> to vector<8x16xf32>
    %21 = vector.broadcast %19 : vector<1x16xf32> to vector<8x16xf32>
    %22 = arith.mulf %20, %21 : vector<8x16xf32>
    %23 = arith.addf %17, %22 : vector<8x16xf32>
    %24 = vector.extract_strided_slice %10 {offsets = [0, 2], sizes = [8, 1], strides = [1, 1]} : vector<8x12xf32> to vector<8x1xf32>
    %25 = vector.extract_strided_slice %7 {offsets = [2, 0], sizes = [1, 16], strides = [1, 1]} : vector<4x16xf32> to vector<1x16xf32>
    %26 = vector.broadcast %24 : vector<8x1xf32> to vector<8x16xf32>
    %27 = vector.broadcast %25 : vector<1x16xf32> to vector<8x16xf32>
    %28 = arith.mulf %26, %27 : vector<8x16xf32>
    %29 = arith.addf %23, %28 : vector<8x16xf32>
    %30 = vector.extract_strided_slice %10 {offsets = [0, 3], sizes = [8, 1], strides = [1, 1]} : vector<8x12xf32> to vector<8x1xf32>
    %31 = vector.extract_strided_slice %7 {offsets = [3, 0], sizes = [1, 16], strides = [1, 1]} : vector<4x16xf32> to vector<1x16xf32>
    %32 = vector.broadcast %30 : vector<8x1xf32> to vector<8x16xf32>
    %33 = vector.broadcast %31 : vector<1x16xf32> to vector<8x16xf32>
    %34 = arith.mulf %32, %33 : vector<8x16xf32>
    %35 = arith.addf %29, %34 : vector<8x16xf32>
    %36 = vector.extract_strided_slice %10 {offsets = [0, 4], sizes = [8, 1], strides = [1, 1]} : vector<8x12xf32> to vector<8x1xf32>
    %37 = vector.extract_strided_slice %8 {offsets = [0, 0], sizes = [1, 16], strides = [1, 1]} : vector<4x16xf32> to vector<1x16xf32>
    %38 = vector.broadcast %36 : vector<8x1xf32> to vector<8x16xf32>
    %39 = vector.broadcast %37 : vector<1x16xf32> to vector<8x16xf32>
    %40 = arith.mulf %38, %39 : vector<8x16xf32>
    %41 = arith.addf %35, %40 : vector<8x16xf32>
    %42 = vector.extract_strided_slice %10 {offsets = [0, 5], sizes = [8, 1], strides = [1, 1]} : vector<8x12xf32> to vector<8x1xf32>
    %43 = vector.extract_strided_slice %8 {offsets = [1, 0], sizes = [1, 16], strides = [1, 1]} : vector<4x16xf32> to vector<1x16xf32>
    %44 = vector.broadcast %42 : vector<8x1xf32> to vector<8x16xf32>
    %45 = vector.broadcast %43 : vector<1x16xf32> to vector<8x16xf32>
    %46 = arith.mulf %44, %45 : vector<8x16xf32>
    %47 = arith.addf %41, %46 : vector<8x16xf32>
    %48 = vector.extract_strided_slice %10 {offsets = [0, 6], sizes = [8, 1], strides = [1, 1]} : vector<8x12xf32> to vector<8x1xf32>
    %49 = vector.extract_strided_slice %8 {offsets = [2, 0], sizes = [1, 16], strides = [1, 1]} : vector<4x16xf32> to vector<1x16xf32>
    %50 = vector.broadcast %48 : vector<8x1xf32> to vector<8x16xf32>
    %51 = vector.broadcast %49 : vector<1x16xf32> to vector<8x16xf32>
    %52 = arith.mulf %50, %51 : vector<8x16xf32>
    %53 = arith.addf %47, %52 : vector<8x16xf32>
    %54 = vector.extract_strided_slice %10 {offsets = [0, 7], sizes = [8, 1], strides = [1, 1]} : vector<8x12xf32> to vector<8x1xf32>
    %55 = vector.extract_strided_slice %8 {offsets = [3, 0], sizes = [1, 16], strides = [1, 1]} : vector<4x16xf32> to vector<1x16xf32>
    %56 = vector.broadcast %54 : vector<8x1xf32> to vector<8x16xf32>
    %57 = vector.broadcast %55 : vector<1x16xf32> to vector<8x16xf32>
    %58 = arith.mulf %56, %57 : vector<8x16xf32>
    %59 = arith.addf %53, %58 : vector<8x16xf32>
    %60 = vector.extract_strided_slice %10 {offsets = [0, 8], sizes = [8, 1], strides = [1, 1]} : vector<8x12xf32> to vector<8x1xf32>
    %61 = vector.extract_strided_slice %9 {offsets = [0, 0], sizes = [1, 16], strides = [1, 1]} : vector<4x16xf32> to vector<1x16xf32>
    %62 = vector.broadcast %60 : vector<8x1xf32> to vector<8x16xf32>
    %63 = vector.broadcast %61 : vector<1x16xf32> to vector<8x16xf32>
    %64 = arith.mulf %62, %63 : vector<8x16xf32>
    %65 = arith.addf %59, %64 : vector<8x16xf32>
    %66 = vector.extract_strided_slice %10 {offsets = [0, 9], sizes = [8, 1], strides = [1, 1]} : vector<8x12xf32> to vector<8x1xf32>
    %67 = vector.extract_strided_slice %9 {offsets = [1, 0], sizes = [1, 16], strides = [1, 1]} : vector<4x16xf32> to vector<1x16xf32>
    %68 = vector.broadcast %66 : vector<8x1xf32> to vector<8x16xf32>
    %69 = vector.broadcast %67 : vector<1x16xf32> to vector<8x16xf32>
    %70 = arith.mulf %68, %69 : vector<8x16xf32>
    %71 = arith.addf %65, %70 : vector<8x16xf32>
    %72 = vector.extract_strided_slice %10 {offsets = [0, 10], sizes = [8, 1], strides = [1, 1]} : vector<8x12xf32> to vector<8x1xf32>
    %73 = vector.extract_strided_slice %9 {offsets = [2, 0], sizes = [1, 16], strides = [1, 1]} : vector<4x16xf32> to vector<1x16xf32>
    %74 = vector.broadcast %72 : vector<8x1xf32> to vector<8x16xf32>
    %75 = vector.broadcast %73 : vector<1x16xf32> to vector<8x16xf32>
    %76 = arith.mulf %74, %75 : vector<8x16xf32>
    %77 = arith.addf %71, %76 : vector<8x16xf32>
    %78 = vector.extract_strided_slice %10 {offsets = [0, 11], sizes = [8, 1], strides = [1, 1]} : vector<8x12xf32> to vector<8x1xf32>
    %79 = vector.extract_strided_slice %9 {offsets = [3, 0], sizes = [1, 16], strides = [1, 1]} : vector<4x16xf32> to vector<1x16xf32>
    %80 = vector.broadcast %78 : vector<8x1xf32> to vector<8x16xf32>
    %81 = vector.broadcast %79 : vector<1x16xf32> to vector<8x16xf32>
    %82 = arith.mulf %80, %81 : vector<8x16xf32>
    %83 = arith.addf %77, %82 : vector<8x16xf32>
    %c0_7 = arith.constant 0 : index
    %c0_8 = arith.constant 0 : index
    %84 = vector.load %arg4[%c0_7, %c0_8] : memref<8x1xf32, #tpu.memory_space<vmem>>, vector<8x1xf32>
    %85 = vector.broadcast %84 : vector<8x1xf32> to vector<8x16xf32>
    %86 = arith.addf %83, %85 : vector<8x16xf32>
    %c0_9 = arith.constant 0 : index
    %c0_10 = arith.constant 0 : index
    %c0_11 = arith.constant 0 : index
    %87 = vector.load %arg5[%c0_9, %c0_10, %c0_11] : memref<1x8x16xf32, #tpu.memory_space<vmem>>, vector<1x8x16xf32>
    %88 = vector.shape_cast %87 : vector<1x8x16xf32> to vector<8x16xf32>
    %89 = vector.shape_cast %86 : vector<8x16xf32> to vector<1x8x16xf32>
    tpu.vector_store %arg5[%c0_9, %c0_10, %c0_11], %89 {strides = array<i32>} : memref<1x8x16xf32, #tpu.memory_space<vmem>>, vector<1x8x16xf32>,
    %90 = vector.extract_strided_slice %1 {offsets = [0, 14], sizes = [4, 2], strides = [1, 1]} : vector<4x16xf32> to vector<4x2xf32>
    %c0_12 = arith.constant 0 : index
    %c0_13 = arith.constant 0 : index
    %91 = vector.load %arg6[%c0_12, %c0_13] : memref<4x2xf32, #tpu.memory_space<vmem>>, vector<4x2xf32>
    tpu.vector_store %arg6[%c0_12, %c0_13], %90 {strides = array<i32>} : memref<4x2xf32, #tpu.memory_space<vmem>>, vector<4x2xf32>,
    return
  }
  func.func @transform_0(%arg0: i32, %arg1: i32) -> (i32, i32, i32) {
    %c0_i32 = arith.constant 0 : i32
    %c0_i32_0 = arith.constant 0 : i32
    return %arg0, %c0_i32, %arg1 : i32, i32, i32
  }
  func.func @transform_1(%arg0: i32, %arg1: i32) -> (i32, i32) {
    %c0_i32 = arith.constant 0 : i32
    %c0_i32_0 = arith.constant 0 : i32
    %c0_i32_1 = arith.constant 0 : i32
    return %c0_i32, %c0_i32_0 : i32, i32
  }
  func.func @transform_2(%arg0: i32, %arg1: i32) -> (i32, i32) {
    %c0_i32 = arith.constant 0 : i32
    %c0_i32_0 = arith.constant 0 : i32
    %c0_i32_1 = arith.constant 0 : i32
    return %c0_i32, %c0_i32_0 : i32, i32
  }
  func.func @transform_3(%arg0: i32, %arg1: i32) -> (i32, i32, i32) {
    %c0_i32 = arith.constant 0 : i32
    %c0_i32_0 = arith.constant 0 : i32
    return %arg0, %c0_i32, %arg1 : i32, i32, i32
  }
}

</mosaic_0001>

<llo_original>
// kernel: tpu_custom_call.1
$region0: #{tpu_custom_call.1}
  #allocation0 [shape = 'u32[]', space=smem, size = 0x4, offset = 0x4, fixed_abs, tag = 'smem constant byte address 0x4 - core index']
  #allocation1 [shape = 'u32[72,128]{1,0:T(1,128)}', space=vmem, size = 0x9000, scoped, tag = 'internal scratch']
  #allocation2 [shape = 'f32[4,2]{1,0:T(4,128)}', space=vmem, size = 0x800, scoped, tag = 'scratch operand']
  %s0 = inlined_call_operand.vmem [shape: f32[2,4,16], index: 0, kind: input, shape index: {}]
  %s1 = inlined_call_operand.hbm [shape: f32[8,12], index: 1, kind: input, shape index: {}]
  %s2 = inlined_call_operand.vmem [shape: f32[8,1], index: 2, kind: input, shape index: {}]
  %s3 = inlined_call_operand.hbm [shape: f32[2,8,16], index: 3, kind: output, shape index: {}]
  %s4 = sld [smem:[#allocation0]]
  $region53: #{tpu_custom_call.1} parent=0
    _
  %s6 = ssub.s32 1, %s4
  %s7 = scalar_select 0, %s6, %s4
  $region1: #{tpu_custom_call.1} parent=0
    #allocation3 [shape = 'u8[4096]{0}', space=vmem, size = 0x1000, scoped, tag = 'input window, operand 1, single buffered']
    #allocation4 [shape = 's32[2]{0}', space=sflag, size = 0x8, scoped, tag = 'scoped memory for tpu_custom_call.1']
    #allocation5 [shape = 's32[2]{0}', space=sflag, size = 0x8, scoped, tag = 'scoped memory for tpu_custom_call.1']
    #allocation6 [shape = 'u8[8192]{0}', space=vmem, size = 0x2000, scoped, tag = 'output window, operand 0']
    %8 = vsyncpa [#allocation4], 0
    %9 = vsyncpa [#allocation5], 0
    %s10 = scalar_lea.sflag [#allocation5], 1
    %11 = vsyncpa %s10, 0
    loop: start=0, step=1, limit=4
    $region2: #{tpu_custom_call.1} parent=1 // loop_pre_header
      _
    $region3: #{tpu_custom_call.1} parent=1 // loop_header
      %s13 = sphi 0, %s17
      %p14 = scmp.ge.s32.totalorder %s13, 4
      %s20 = sphi 0, %s32
      %s21 = sphi 0, %s28
      %s22 = sphi 0, %s20
      %s23 = sphi 0, %s21
      %s24 = sphi 0, %s22
      %s25 = sphi 0, %s23
      %s37 = sphi 0, %s39
      %s40 = sphi 0, %s37
      %s41 = sphi 0, %s40
      %s57 = sphi 0, %s41
      %s61 = sphi 0, %s61
      %s63 = sphi 0, %s61
      %s64 = sphi 0, %s63
      %s78 = sphi 0, %s64
      %s82 = sphi 0, %s82
      %s84 = sphi 0, %s82
      %s85 = sphi 0, %s84
      %s99 = sphi 0, %s85
      %s107 = sphi 0, %s109
      %s110 = sphi 0, %s107
      %s111 = sphi 0, %s110
      %s127 = sphi 0, %s111
    $region4: #{tpu_custom_call.1} parent=1 // loop_header_branch
      %16 = sbr.rel (%p14) target = $region8
    $region5: #{tpu_custom_call.1} parent=1 // loop_body
      %s18 = ssub.s32 %s13, 1
      %s19 = ssub.s32 %s13, 2
      %s26 = sadd.s32 1, %s21
      %p27 = scmp.ge.s32.totalorder %s26, 1
      %s28 = scalar_select %p27, 0, %s26
      %s29 = sadd.s32 1, %s20
      %s30 = scalar_select %p27, %s29, %s20
      %p31 = scmp.ge.s32.totalorder %s30, 2
      %s32 = scalar_select %p31, 0, %s30
      %s33 = ssub.s32 %s20, %s32
      %s34 = ssub.s32 %s21, %s28
      %s35 = sor.u32 %s33, %s34
      %p36 = scmp.eq.s32.totalorder %s35, 0
      %s38 = sadd.s32 %s37, 1
      %s39 = scalar_select %p36, %s37, %s38
      %p42 = pneg %p36
      %p43 = scmp.eq.s32.totalorder %s13, 1
      %p44 = por %p42, %p43
      %p45 = scmp.ne.s32.totalorder %s37, %s40
      %p46 = scmp.eq.s32.totalorder %s13, 0
      %p47 = por %p45, %p46
      %p48 = scmp.ne.s32.totalorder %s37, %s40
      %p49 = scmp.eq.s32.totalorder %s18, 1
      %p50 = por %p48, %p49
      %p51 = scmp.ne.s32.totalorder %s40, %s41
      %p52 = scmp.eq.s32.totalorder %s18, 0
      %p53 = por %p51, %p52
      %p54 = scmp.ne.s32.totalorder %s40, %s41
      %p55 = scmp.eq.s32.totalorder %s19, 1
      %p56 = por %p54, %p55
      %p58 = scmp.ne.s32.totalorder %s41, %s57
      %p59 = scmp.eq.s32.totalorder %s19, 0
      %p60 = por %p58, %p59
      %s62 = sadd.s32 %s61, 1
      %p65 = scmp.eq.s32.totalorder %s13, 1
      %p66 = scmp.ne.s32.totalorder %s61, %s63
      %p67 = scmp.eq.s32.totalorder %s13, 0
      %p68 = por %p66, %p67
      %p69 = scmp.ne.s32.totalorder %s61, %s63
      %p70 = scmp.eq.s32.totalorder %s18, 1
      %p71 = por %p69, %p70
      %p72 = scmp.ne.s32.totalorder %s63, %s64
      %p73 = scmp.eq.s32.totalorder %s18, 0
      %p74 = por %p72, %p73
      %p75 = scmp.ne.s32.totalorder %s63, %s64
      %p76 = scmp.eq.s32.totalorder %s19, 1
      %p77 = por %p75, %p76
      %p79 = scmp.ne.s32.totalorder %s64, %s78
      %p80 = scmp.eq.s32.totalorder %s19, 0
      %p81 = por %p79, %p80
      %s83 = sadd.s32 %s82, 1
      %p86 = scmp.eq.s32.totalorder %s13, 1
      %p87 = scmp.ne.s32.totalorder %s82, %s84
      %p88 = scmp.eq.s32.totalorder %s13, 0
      %p89 = por %p87, %p88
      %p90 = scmp.ne.s32.totalorder %s82, %s84
      %p91 = scmp.eq.s32.totalorder %s18, 1
      %p92 = por %p90, %p91
      %p93 = scmp.ne.s32.totalorder %s84, %s85
      %p94 = scmp.eq.s32.totalorder %s18, 0
      %p95 = por %p93, %p94
      %p96 = scmp.ne.s32.totalorder %s84, %s85
      %p97 = scmp.eq.s32.totalorder %s19, 1
      %p98 = por %p96, %p97
      %p100 = scmp.ne.s32.totalorder %s85, %s99
      %p101 = scmp.eq.s32.totalorder %s19, 0
      %p102 = por %p100, %p101
      %s103 = ssub.s32 %s20, %s32
      %s104 = ssub.s32 %s21, %s28
      %s105 = sor.u32 %s103, %s104
      %p106 = scmp.eq.s32.totalorder %s105, 0
      %s108 = sadd.s32 %s107, 1
      %s109 = scalar_select %p106, %s107, %s108
      %p112 = pneg %p106
      %p113 = scmp.eq.s32.totalorder %s13, 1
      %p114 = por %p112, %p113
      %p115 = scmp.ne.s32.totalorder %s107, %s110
      %p116 = scmp.eq.s32.totalorder %s13, 0
      %p117 = por %p115, %p116
      %p118 = scmp.ne.s32.totalorder %s107, %s110
      %p119 = scmp.eq.s32.totalorder %s18, 1
      %p120 = por %p118, %p119
      %p121 = scmp.ne.s32.totalorder %s110, %s111
      %p122 = scmp.eq.s32.totalorder %s18, 0
      %p123 = por %p121, %p122
      %p124 = scmp.ne.s32.totalorder %s110, %s111
      %p125 = scmp.eq.s32.totalorder %s19, 1
      %p126 = por %p124, %p125
      %p128 = scmp.ne.s32.totalorder %s111, %s127
      %p129 = scmp.eq.s32.totalorder %s19, 0
      %p130 = por %p128, %p129
      %p131 = scmp.le.s32.totalorder 1, %s13
      %p132 = scmp.lt.s32.totalorder %s13, 3
      %p133 = pnand %p131, %p132
      %p134 = pneg %p133
      // Predicated region
      $region9: #{tpu_custom_call.1} parent=5 // pred_check
        _
      $region10: #{tpu_custom_call.1} parent=5 // pred_check_branch
        %136 = sbr.rel (%p133) target = $region12
      $region11: #{tpu_custom_call.1} parent=5 // pred_region
        %s137 = ssub.s32 %s13, 1
        // Predicated region
        $region13: #{tpu_custom_call.1} parent=11 // pred_check
          %p138 = pneg %p74
        $region14: #{tpu_custom_call.1} parent=11 // pred_check_branch
          %140 = sbr.rel (%p138) target = $region16
        $region15: #{tpu_custom_call.1} parent=11 // pred_region
          %142 = vsyncadd [#allocation4], 0
          %s144 = sshll.u32 %s1, 4
          %s145 = int_to_ptr.hbm [resolvable:$true] %s144
          %s146 = sshll.u32 [#allocation3], 4
          %s147 = int_to_ptr.vmem [resolvable:$true] %s146
          %149 = dma.hbm_to_vmem [thread:$0]  %s145, 128, %s147, [#allocation4]
        $region16: #{tpu_custom_call.1} parent=11 // pred_fallthru
          _
        // Predicated region
        $region17: #{tpu_custom_call.1} parent=11 // pred_check
          %p150 = pneg %p95
        $region18: #{tpu_custom_call.1} parent=11 // pred_check_branch
          %152 = sbr.rel (%p150) target = $region20
        $region19: #{tpu_custom_call.1} parent=11 // pred_region
          _
        $region20: #{tpu_custom_call.1} parent=11 // pred_fallthru
          _
      $region12: #{tpu_custom_call.1} parent=5 // pred_fallthru
        _
      %p153 = scmp.lt.s32.totalorder %s13, 2
      // Predicated region
      $region21: #{tpu_custom_call.1} parent=5 // pred_check
        %p154 = pneg %p153
      $region22: #{tpu_custom_call.1} parent=5 // pred_check_branch
        %156 = sbr.rel (%p154) target = $region24
      $region23: #{tpu_custom_call.1} parent=5 // pred_region
        // Predicated region
        $region25: #{tpu_custom_call.1} parent=23 // pred_check
          %p157 = pneg %p47
        $region26: #{tpu_custom_call.1} parent=23 // pred_check_branch
          %159 = sbr.rel (%p157) target = $region28
        $region27: #{tpu_custom_call.1} parent=23 // pred_region
          %p160 = scmp.lt.s32.totalorder %s20, 1
          %s161 = scalar_select %p160, %s20, 1
          %p162 = scmp.lt.s32.totalorder %s21, 0
          %s163 = scalar_select %p162, %s21, 0
          %s164 = sadd.s32 %s163, %s161
          %s165 = smul.addr %s164, 4
          %s166 = scalar_lea.vmem %s0, %s165
        $region28: #{tpu_custom_call.1} parent=23 // pred_fallthru
          _
      $region24: #{tpu_custom_call.1} parent=5 // pred_fallthru
        _
      %p167 = scmp.le.s32.totalorder 1, %s13
      %p168 = scmp.lt.s32.totalorder %s13, 3
      %p169 = pnand %p167, %p168
      %p170 = pneg %p169
      // Predicated region
      $region29: #{tpu_custom_call.1} parent=5 // pred_check
        _
      $region30: #{tpu_custom_call.1} parent=5 // pred_check_branch
        %172 = sbr.rel (%p169) target = $region32
      $region31: #{tpu_custom_call.1} parent=5 // pred_region
        %s173 = ssub.s32 %s13, 1
        // Predicated region
        $region33: #{tpu_custom_call.1} parent=31 // pred_check
          %p174 = pneg %p74
        $region34: #{tpu_custom_call.1} parent=31 // pred_check_branch
          %176 = sbr.rel (%p174) target = $region36
        $region35: #{tpu_custom_call.1} parent=31 // pred_region
          %178 = dma.done [#allocation4], 128
        $region36: #{tpu_custom_call.1} parent=31 // pred_fallthru
          _
        %p179 = scmp.lt.s32.totalorder %s22, 1
        %s180 = scalar_select %p179, %s22, 1
        %p181 = scmp.lt.s32.totalorder %s23, 0
        %s182 = scalar_select %p181, %s23, 0
        %s183 = sadd.s32 %s182, %s180
        %s184 = smul.addr %s183, 4
        %s185 = scalar_lea.vmem %s0, %s184
        %p186 = pneg %p53
        %p187 = pneg %p50
        %p188 = pneg %p74
        %p189 = pneg %p71
        %p190 = pneg %p95
        %p191 = pneg %p92
        %p192 = pneg %p123
        %p193 = pneg %p120
        %s194 = sand.u32 %s110, 1
        %s195 = scalar_lea.sflag [#allocation5], %s194
        %s196 = sand.u32 %s110, 1
        %s197 = smul.addr %s196, 8
        %s198 = scalar_lea.vmem [#allocation6], %s197
        %p199 = scmp.lt.s32.totalorder %s22, 1
        %s200 = scalar_select %p199, %s22, 1
        %p201 = scmp.lt.s32.totalorder %s23, 0
        %s202 = scalar_select %p201, %s23, 0
        %s203 = sadd.s32 %s202, %s200
        %s204 = smul.addr %s203, 4
        %s205 = scalar_lea.vmem %s0, %s204
        %v206 = vld [vmem:[%s205] sm:$0xf]
        %p207 = scmp.eq.s32.totalorder %s23, 0
        // Predicated region
        $region37: #{tpu_custom_call.1} parent=31 // pred_check
          %p208 = pneg %p207
        $region38: #{tpu_custom_call.1} parent=31 // pred_check_branch
          %210 = sbr.rel (%p208) target = $region40
        $region39: #{tpu_custom_call.1} parent=31 // pred_region
          %vm211 = vcmask 11264
          %212 = vst.msk [vmem:[#allocation2] sm:$0xf] %vm211, 0.0
        $region40: #{tpu_custom_call.1} parent=31 // pred_fallthru
          _
        %v213 = vld [vmem:[#allocation2] sm:$0xf]
        %215 = vrot.lane.b32.xlu0 %v206, 2
        %v216 = vpop.permute.xlu0 %215
        %vm218 = vcmask 15360
        %v219 = vsel %vm218, %v213, %v216
        %v220 = vld [vmem:[#allocation3] sm:$0xff]
        %222 = vset.pattern.permute.xlu0 0
        %223 = vperm.xlu0 %222, %v220
        %v224 = vpop.permute.xlu0 %223
        %v226 = vperm.slane %v219, 0
        %v227 = vmul.f32 %v224, %v226
        %v228 = vadd.f32 %v227, 0.0
        %229 = vset.pattern.permute.xlu0 1
        %230 = vperm.xlu0 %229, %v220
        %v231 = vpop.permute.xlu0 %230
        %v233 = vperm.slane %v219, 1
        %v234 = vmul.f32 %v231, %v233
        %v235 = vadd.f32 %v228, %v234
        %236 = vset.pattern.permute.xlu0 2
        %237 = vperm.xlu0 %236, %v220
        %v238 = vpop.permute.xlu0 %237
        %v240 = vperm.slane %v219, 2
        %v241 = vmul.f32 %v238, %v240
        %v242 = vadd.f32 %v235, %v241
        %243 = vset.pattern.permute.xlu0 3
        %244 = vperm.xlu0 %243, %v220
        %v245 = vpop.permute.xlu0 %244
        %v247 = vperm.slane %v219, 3
        %v248 = vmul.f32 %v245, %v247
        %v249 = vadd.f32 %v242, %v248
        %250 = vset.pattern.permute.xlu0 4
        %251 = vperm.xlu0 %250, %v220
        %v252 = vpop.permute.xlu0 %251
        %v254 = vmul.f32 %v252, %v226
        %256 = vrot.lane.b32.xlu0 %v254, 127
        %v257 = vpop.permute.xlu0 %256
        %v259 = vadd.f32 %v249, %v257
        %260 = vset.pattern.permute.xlu0 5
        %261 = vperm.xlu0 %260, %v220
        %v262 = vpop.permute.xlu0 %261
        %v264 = vmul.f32 %v262, %v233
        %266 = vrot.lane.b32.xlu0 %v264, 127
        %v267 = vpop.permute.xlu0 %266
        %v269 = vadd.f32 %v259, %v267
        %270 = vset.pattern.permute.xlu0 6
        %271 = vperm.xlu0 %270, %v220
        %v272 = vpop.permute.xlu0 %271
        %v274 = vmul.f32 %v272, %v240
        %276 = vrot.lane.b32.xlu0 %v274, 127
        %v277 = vpop.permute.xlu0 %276
        %v279 = vadd.f32 %v269, %v277
        %280 = vset.pattern.permute.xlu0 7
        %281 = vperm.xlu0 %280, %v220
        %v282 = vpop.permute.xlu0 %281
        %v284 = vmul.f32 %v282, %v247
        %286 = vrot.lane.b32.xlu0 %v284, 127
        %v287 = vpop.permute.xlu0 %286
        %v289 = vadd.f32 %v279, %v287
        %290 = vset.pattern.permute.xlu0 8
        %291 = vperm.xlu0 %290, %v220
        %v292 = vpop.permute.xlu0 %291
        %v294 = vmul.f32 %v292, %v226
        %296 = vrot.lane.b32.xlu0 %v294, 126
        %v297 = vpop.permute.xlu0 %296
        %v299 = vadd.f32 %v289, %v297
        %300 = vset.pattern.permute.xlu0 9
        %301 = vperm.xlu0 %300, %v220
        %v302 = vpop.permute.xlu0 %301
        %v304 = vmul.f32 %v302, %v233
        %306 = vrot.lane.b32.xlu0 %v304, 126
        %v307 = vpop.permute.xlu0 %306
        %v309 = vadd.f32 %v299, %v307
        %310 = vset.pattern.permute.xlu0 10
        %311 = vperm.xlu0 %310, %v220
        %v312 = vpop.permute.xlu0 %311
        %v314 = vmul.f32 %v312, %v240
        %316 = vrot.lane.b32.xlu0 %v314, 126
        %v317 = vpop.permute.xlu0 %316
        %v319 = vadd.f32 %v309, %v317
        %320 = vset.pattern.permute.xlu0 11
        %321 = vperm.xlu0 %320, %v220
        %v322 = vpop.permute.xlu0 %321
        %v324 = vmul.f32 %v322, %v247
        %326 = vrot.lane.b32.xlu0 %v324, 126
        %v327 = vpop.permute.xlu0 %326
        %v329 = vadd.f32 %v319, %v327
        %v330 = vld [vmem:[%s2] sm:$0xff]
        %332 = vset.pattern.permute.xlu0 0
        %333 = vperm.xlu0 %332, %v330
        %v334 = vpop.permute.xlu0 %333
        %v336 = vadd.f32 %v329, %v334
        %vm337 = vcmask 130048
        %338 = vst.msk [vmem:[%s198] sm:$0xff] %vm337, %v336
        %339 = vrot.lane.b32.xlu0 %v206, 114
        %v340 = vpop.permute.xlu0 %339
        %vm342 = vcmask 11264
        %343 = vst.msk [vmem:[#allocation2] sm:$0xf] %vm342, %v340
        %s344 = sand.u32 %s110, 1
        %s345 = scalar_lea.sflag [#allocation5], %s344
        %s346 = sand.u32 %s110, 1
        %s347 = smul.addr %s346, 8
        %s348 = scalar_lea.vmem [#allocation6], %s347
        // Predicated region
        $region41: #{tpu_custom_call.1} parent=31 // pred_check
          %p349 = pneg %p120
        $region42: #{tpu_custom_call.1} parent=31 // pred_check_branch
          %351 = sbr.rel (%p349) target = $region44
        $region43: #{tpu_custom_call.1} parent=31 // pred_region
          %353 = vsyncadd %s345, 0
          %s354 = sadd.s32 %s23, %s22
          %s355 = smul.addr %s354, 8
          %s356 = scalar_lea.hbm %s3, %s355
          %s358 = sshll.u32 %s348, 4
          %s359 = int_to_ptr.vmem [resolvable:$true] %s358
          %s360 = sshll.u32 %s356, 4
          %s361 = int_to_ptr.hbm [resolvable:$true] %s360
          %363 = dma.vmem_to_hbm [thread:$0]  %s359, 128, %s361, %s345
        $region44: #{tpu_custom_call.1} parent=31 // pred_fallthru
          _
      $region32: #{tpu_custom_call.1} parent=5 // pred_fallthru
        _
      %p364 = scmp.le.s32.totalorder 2, %s13
      // Predicated region
      $region45: #{tpu_custom_call.1} parent=5 // pred_check
        %p365 = pneg %p364
      $region46: #{tpu_custom_call.1} parent=5 // pred_check_branch
        %367 = sbr.rel (%p365) target = $region48
      $region47: #{tpu_custom_call.1} parent=5 // pred_region
        %s368 = ssub.s32 %s13, 2
        // Predicated region
        $region49: #{tpu_custom_call.1} parent=47 // pred_check
          %p369 = pneg %p126
        $region50: #{tpu_custom_call.1} parent=47 // pred_check_branch
          %371 = sbr.rel (%p369) target = $region52
        $region51: #{tpu_custom_call.1} parent=47 // pred_region
          %s372 = sand.u32 %s111, 1
          %s373 = scalar_lea.sflag [#allocation5], %s372
          %s374 = sand.u32 %s111, 1
          %s375 = smul.addr %s374, 8
          %s376 = scalar_lea.vmem [#allocation6], %s375
          %378 = dma.done %s373, 128
        $region52: #{tpu_custom_call.1} parent=47 // pred_fallthru
          _
      $region48: #{tpu_custom_call.1} parent=5 // pred_fallthru
        _
    $region6: #{tpu_custom_call.1} parent=1 // loop_footer
      %s17 = sadd.s32 1, %s13
    $region7: #{tpu_custom_call.1} parent=1 // loop_footer_branch
      %12 = sbr.rel target = $region3
    $region8: #{tpu_custom_call.1} parent=1 // loop_exit
      _
    %379 = vsyncpa [#allocation4], 1
    %s380 = scalar_lea.sflag [#allocation4], 1
    %381 = vsyncpa %s380, 1
    %382 = vsyncpa [#allocation5], 1
    %s383 = scalar_lea.sflag [#allocation5], 1
    %384 = vsyncpa %s383, 1

</llo_original>
